<compile_context>
chip_gen: v5e
topology: v5e:2x2
jax: 0.10.0
libtpu: 0.0.40
codegen_flags: <defaults>
</compile_context>

<pallas_src>
import jax
import jax.numpy as jnp
from jax import lax
from jax.experimental import pallas as pl
from jax.experimental.pallas import tpu as pltpu


def _projection_share_kernel(x_ref, w_cat_ref, w_bd_ref, o_ref):
    # x_ref:     (TN, D_in)
    # w_cat_ref: (D_in, M*D_out)    -- [W_0 | W_1 | ... | W_{M-1}]
    # w_bd_ref:  (M*D_out, M*D_in)  -- blockdiag(W_0^T, ..., W_{M-1}^T)
    # o_ref:     (TN, M*D_in)       -- o[n, m*D_in + i] = (W_m W_m^T x_n)[i]
    a = jnp.dot(
        x_ref[...], w_cat_ref[...],
        preferred_element_type=jnp.float32,
        precision=lax.Precision.HIGHEST,
    )                                                   # (TN, M*D_out)
    o_ref[...] = jnp.dot(
        a, w_bd_ref[...],
        preferred_element_type=jnp.float32,
        precision=lax.Precision.HIGHEST,
    ).astype(o_ref.dtype)                               # (TN, M*D_in)


def _prep_weights(weight):
    """(M, D_in, D_out) -> lane-dense, contraction-friendly matmul operands."""
    M, D_in, D_out = weight.shape
    w = weight.astype(jnp.float32)
    # W_cat[i, m*D_out + o] = W[m, i, o]
    w_cat = jnp.transpose(w, (1, 0, 2)).reshape(D_in, M * D_out)
    # blockdiag of W_m^T: w_bd[m*D_out + o, k*D_in + i] = delta(m,k) * W[m, i, o]
    w_t = jnp.transpose(w, (0, 2, 1))                   # (M, D_out, D_in)
    w_bd = jnp.einsum(
        "mk,moi->moki", jnp.eye(M, dtype=jnp.float32), w_t
    ).reshape(M * D_out, M * D_in)
    return w_cat, w_bd


def projection_share_forward(weight, x, *, n_tile=None):
    """weight: (M, D_in, D_out), x: (N, D_in) -> (N, M, D_in)."""
    M, D_in, D_out = weight.shape
    N, D_in_x = x.shape
    assert D_in_x == D_in

    w_cat, w_bd = _prep_weights(weight)
    x32 = x.astype(jnp.float32)
    out_lanes = M * D_in                                # 128 for the shipped config

    # Auto-enable N tiling only when the batch is big enough to benefit.
    if n_tile is None and N > 512:
        n_tile = 1024

    if n_tile is None:
        # Shipped-shape path: no grid, no double buffering -- whole operands in
        # VMEM, single kernel invocation (problem is launch-overhead bound).
        out_flat = pl.pallas_call(
            _projection_share_kernel,
            out_shape=jax.ShapeDtypeStruct((N, out_lanes), jnp.float32),
            in_specs=[
                pl.BlockSpec(memory_space=pltpu.MemorySpace.VMEM),
                pl.BlockSpec(memory_space=pltpu.MemorySpace.VMEM),
                pl.BlockSpec(memory_space=pltpu.MemorySpace.VMEM),
            ],
            out_specs=pl.BlockSpec(memory_space=pltpu.MemorySpace.VMEM),
        )(x32, w_cat, w_bd)
    else:
        # Large-N path: stream X / out over a 1-D grid, keep the tiny weight
        # operands pinned, and mark the N axis "parallel" so v7x's two
        # TensorCores split it.  Per-tile VMEM at n_tile=1024 is ~1.3 MiB
        # including double buffering (<< 32 MiB scoped default), so no
        # vmem_limit_bytes override is needed.
        tn = min(n_tile, N)
        out_flat = pl.pallas_call(
            _projection_share_kernel,
            out_shape=jax.ShapeDtypeStruct((N, out_lanes), jnp.float32),
            grid=(pl.cdiv(N, tn),),
            in_specs=[
                pl.BlockSpec((tn, D_in), lambda i: (i, 0)),
                pl.BlockSpec((D_in, M * D_out), lambda i: (0, 0)),
                pl.BlockSpec((M * D_out, out_lanes), lambda i: (0, 0)),
            ],
            out_specs=pl.BlockSpec((tn, out_lanes), lambda i: (i, 0)),
            compiler_params=pltpu.CompilerParams(
                dimension_semantics=("parallel",),
            ),
        )(x32, w_cat, w_bd)

    # Free reshape (no extra HBM transpose pass): (N, M*D_in) -> (N, M, D_in).
    return out_flat.reshape(N, M, D_in)


def _reference(weight, x):
    # Same math as the torch forward, in plain JAX.
    a = jnp.einsum("mio,ni->mon", weight, x, precision=lax.Precision.HIGHEST)
    b = jnp.einsum("mio,mon->min", weight, a, precision=lax.Precision.HIGHEST)
    return jnp.transpose(b, (2, 0, 1))


if __name__ == "__main__":
    M, D_in, D_out = 4, 32, 16

    key = jax.random.PRNGKey(0)
    k_w, k_x1, k_x2 = jax.random.split(key, 3)

    # Deterministic parameter init: normal(std=0.01), as in nn.init.normal_.
    weight = 0.01 * jax.random.normal(k_w, (M, D_in, D_out), dtype=jnp.float32)

    # 1) Shipped shapes (N=8): no-grid path.
    N_small = 8
    x_small = jax.random.normal(k_x1, (N_small, D_in), dtype=jnp.float32)
    out_small = jax.block_until_ready(projection_share_forward(weight, x_small))
    assert out_small.shape == (N_small, M, D_in)
    assert jnp.allclose(out_small, _reference(weight, x_small), atol=1e-5, rtol=1e-5)

    # 2) Tiled-path sanity check (exercises the grid / pinned-weight specs).
    N_big = 256
    x_big = jax.random.normal(k_x2, (N_big, D_in), dtype=jnp.float32)
    out_big = jax.block_until_ready(
        projection_share_forward(weight, x_big, n_tile=128)
    )
    assert out_big.shape == (N_big, M, D_in)
    assert jnp.allclose(out_big, _reference(weight, x_big), atol=1e-5, rtol=1e-5)

    print("KERNEL_OK")
</pallas_src>

<mosaic_0001>
module attributes {stable_mosaic.version = 11 : i64} {
  func.func @_projection_share_kernel(%arg0: memref<8x32xf32, #tpu.memory_space<vmem>>, %arg1: memref<32x64xf32, #tpu.memory_space<vmem>>, %arg2: memref<64x128xf32, #tpu.memory_space<vmem>>, %arg3: memref<8x128xf32, #tpu.memory_space<vmem>>) attributes {dimension_semantics = [], scalar_prefetch = 0 : i64, scratch_operands = 0 : i64, tpu.core_type = #tpu.core_type<tc>} {
    %c0 = arith.constant 0 : index
    %c0_0 = arith.constant 0 : index
    %0 = vector.load %arg0[%c0, %c0_0] : memref<8x32xf32, #tpu.memory_space<vmem>>, vector<8x32xf32>
    %c0_1 = arith.constant 0 : index
    %c0_2 = arith.constant 0 : index
    %1 = vector.load %arg1[%c0_1, %c0_2] : memref<32x64xf32, #tpu.memory_space<vmem>>, vector<32x64xf32>
    %cst = arith.constant dense<0.000000e+00> : vector<8x64xf32>
    %2 = tpu.matmul %0, %1, %cst {dimension_numbers = #tpu.dot_dimension_numbers<[1], [0], [0], [1], [0, 0, 1, 1], [], []>, precision = #tpu.contract_precision<fp32>} : vector<8x32xf32>, vector<32x64xf32>, vector<8x64xf32> -> vector<8x64xf32>
    %c0_3 = arith.constant 0 : index
    %c0_4 = arith.constant 0 : index
    %3 = vector.load %arg2[%c0_3, %c0_4] : memref<64x128xf32, #tpu.memory_space<vmem>>, vector<64x128xf32>
    %cst_5 = arith.constant dense<0.000000e+00> : vector<8x128xf32>
    %4 = tpu.matmul %2, %3, %cst_5 {dimension_numbers = #tpu.dot_dimension_numbers<[1], [0], [0], [1], [0, 0, 1, 1], [], []>, precision = #tpu.contract_precision<fp32>} : vector<8x64xf32>, vector<64x128xf32>, vector<8x128xf32> -> vector<8x128xf32>
    %c0_6 = arith.constant 0 : index
    %c0_7 = arith.constant 0 : index
    %5 = vector.load %arg3[%c0_6, %c0_7] : memref<8x128xf32, #tpu.memory_space<vmem>>, vector<8x128xf32>
    tpu.vector_store %arg3[%c0_6, %c0_7], %4 {strides = array<i32>} : memref<8x128xf32, #tpu.memory_space<vmem>>, vector<8x128xf32>,
    return
  }
}

</mosaic_0001>

<llo_original>
// kernel: tpu_custom_call.1
$region0: #{tpu_custom_call.1}
  #allocation0 [shape = 'u32[]', space=smem, size = 0x4, offset = 0x4, fixed_abs, tag = 'smem constant byte address 0x4 - core index']
  #allocation1 [shape = 'u32[72,128]{1,0:T(1,128)}', space=vmem, size = 0x9000, scoped, tag = 'internal scratch']
  %s0 = inlined_call_operand.hbm [shape: f32[8,32], index: 0, kind: input, shape index: {}]
  %s1 = inlined_call_operand.hbm [shape: f32[32,64], index: 1, kind: input, shape index: {}]
  %s2 = inlined_call_operand.hbm [shape: f32[64,128], index: 2, kind: input, shape index: {}]
  %s3 = inlined_call_operand.hbm [shape: f32[8,128], index: 3, kind: output, shape index: {}]
  %s4 = sld [smem:[#allocation0]]
  $region34: #{tpu_custom_call.1} parent=0
    _
  %s6 = ssub.s32 1, %s4
  %s7 = scalar_select 0, %s6, %s4
  $region1: #{tpu_custom_call.1} parent=0
    #allocation2 [shape = 'u8[4096]{0}', space=vmem, size = 0x1000, scoped, tag = 'input window, operand 0, single buffered']
    #allocation3 [shape = 's32[1]{0}', space=sflag, size = 0x4, scoped, tag = 'scoped memory for tpu_custom_call.1']
    #allocation4 [shape = 's32[1]{0}', space=sflag, size = 0x4, scoped, tag = 'scoped memory for tpu_custom_call.1']
    #allocation5 [shape = 'u8[16384]{0}', space=vmem, size = 0x4000, scoped, tag = 'input window, operand 1, single buffered']
    #allocation6 [shape = 's32[1]{0}', space=sflag, size = 0x4, scoped, tag = 'scoped memory for tpu_custom_call.1']
    #allocation7 [shape = 'u8[32768]{0}', space=vmem, size = 0x8000, scoped, tag = 'input window, operand 2, single buffered']
    #allocation8 [shape = 'u8[4096]{0}', space=vmem, size = 0x1000, scoped, tag = 'output window, operand 0, single buffered']
    %8 = vsyncpa [#allocation3], 0
    %9 = vsyncpa [#allocation6], 0
    %10 = vsyncpa [#allocation4], 0
    // Predicated region
    $region2: #{tpu_custom_call.1} parent=1 // pred_check
      _
    $region3: #{tpu_custom_call.1} parent=1 // pred_check_branch
      %12 = sbr.rel (0) target = $region5
    $region4: #{tpu_custom_call.1} parent=1 // pred_region
      %14 = vsyncadd [#allocation3], 0
      %s16 = sshll.u32 %s0, 4
      %s17 = int_to_ptr.hbm [resolvable:$true] %s16
      %s18 = sshll.u32 [#allocation2], 4
      %s19 = int_to_ptr.vmem [resolvable:$true] %s18
      %21 = dma.hbm_to_vmem [thread:$0]  %s17, 128, %s19, [#allocation3]
    $region5: #{tpu_custom_call.1} parent=1 // pred_fallthru
      _
    // Predicated region
    $region6: #{tpu_custom_call.1} parent=1 // pred_check
      _
    $region7: #{tpu_custom_call.1} parent=1 // pred_check_branch
      %23 = sbr.rel (0) target = $region9
    $region8: #{tpu_custom_call.1} parent=1 // pred_region
      %25 = vsyncadd [#allocation6], 0
      %s26 = sshll.u32 %s1, 4
      %s27 = int_to_ptr.hbm [resolvable:$true] %s26
      %s28 = sshll.u32 [#allocation5], 4
      %s29 = int_to_ptr.vmem [resolvable:$true] %s28
      %34 = dma.hbm_to_vmem [thread:$0]  %s27, 512, %s29, [#allocation6], 128, 128, 8
    $region9: #{tpu_custom_call.1} parent=1 // pred_fallthru
      _
    // Predicated region
    $region10: #{tpu_custom_call.1} parent=1 // pred_check
      _
    $region11: #{tpu_custom_call.1} parent=1 // pred_check_branch
      %36 = sbr.rel (0) target = $region13
    $region12: #{tpu_custom_call.1} parent=1 // pred_region
      %38 = vsyncadd [#allocation6], 0
      %s39 = sshll.u32 %s2, 4
      %s40 = int_to_ptr.hbm [resolvable:$true] %s39
      %s41 = sshll.u32 [#allocation7], 4
      %s42 = int_to_ptr.vmem [resolvable:$true] %s41
      %47 = dma.hbm_to_vmem [thread:$0]  %s40, 1024, %s42, [#allocation6], 128, 128, 8
    $region13: #{tpu_custom_call.1} parent=1 // pred_fallthru
      _
    // Predicated region
    $region14: #{tpu_custom_call.1} parent=1 // pred_check
      _
    $region15: #{tpu_custom_call.1} parent=1 // pred_check_branch
      %49 = sbr.rel (0) target = $region17
    $region16: #{tpu_custom_call.1} parent=1 // pred_region
      %51 = dma.done [#allocation3], 128
    $region17: #{tpu_custom_call.1} parent=1 // pred_fallthru
      _
    // Predicated region
    $region18: #{tpu_custom_call.1} parent=1 // pred_check
      _
    $region19: #{tpu_custom_call.1} parent=1 // pred_check_branch
      %53 = sbr.rel (0) target = $region21
    $region20: #{tpu_custom_call.1} parent=1 // pred_region
      %55 = dma.done [#allocation6], 512
    $region21: #{tpu_custom_call.1} parent=1 // pred_fallthru
      _
    // Predicated region
    $region22: #{tpu_custom_call.1} parent=1 // pred_check
      _
    $region23: #{tpu_custom_call.1} parent=1 // pred_check_branch
      %57 = sbr.rel (0) target = $region25
    $region24: #{tpu_custom_call.1} parent=1 // pred_region
      %59 = dma.done [#allocation6], 1024
    $region25: #{tpu_custom_call.1} parent=1 // pred_fallthru
      _
    %v60 = vld [vmem:[#allocation2] sm:$0xff]
    %v61 = vld [vmem:[#allocation5] sm:$0xff]
    %v62 = vld [vmem:[#allocation5 + $0x8] sm:$0xff]
    %v63 = vld [vmem:[#allocation5 + $0x10] sm:$0xff]
    %v64 = vld [vmem:[#allocation5 + $0x18] sm:$0xff]
    %vm65 = vcmask 261120
    %v67 = vsel %vm65, %v60, 0
    %69 = vmatpush.msra.mxu0 0.0
    %70 = vmatpush.msra.mxu0 0.0
    %71 = vmatpush.msra.mxu0 0.0
    %72 = vmatpush.msra.mxu0 0.0
    %73 = vmatpush.msra.mxu0 0.0
    %74 = vmatpush.msra.mxu0 0.0
    %75 = vmatpush.msra.mxu0 0.0
    %76 = vmatpush.msra.mxu0 0.0
    %77 = vmatpush.msra.mxu0 0.0
    %78 = vmatpush.msra.mxu0 0.0
    %79 = vmatpush.msra.mxu0 0.0
    %80 = vmatpush.msra.mxu0 0.0
    %v81 = vand.u32 %v64, 4294901760
    %82 = vmatpush.msra.mxu0 %v81
    %v83 = vand.u32 %v63, 4294901760
    %84 = vmatpush.msra.mxu0 %v83
    %v85 = vand.u32 %v62, 4294901760
    %86 = vmatpush.msra.mxu0 %v85
    %v87 = vand.u32 %v61, 4294901760
    %88 = vmatpush.msra.mxu0 %v87
    %v89 = vand.u32 %v67, 4294901760
    %v90 = vsub.f32 %v67, %v89
    %v91 = vand.u32 %v90, 4294901760
    %v92 = vsub.f32 %v90, %v91
    %v93 = vand.u32 %v92, 4294901760
    %94 = vmatmul.f32.gmra.mxu0 %v93
    %v95 = vpop.f32.mrf.mxu0
    %v96 = vadd.f32 0.0, %v95
    %97 = vdwg.mxu0
    %98 = vmatpush.msra.mxu0 0.0
    %99 = vmatpush.msra.mxu0 0.0
    %100 = vmatpush.msra.mxu0 0.0
    %101 = vmatpush.msra.mxu0 0.0
    %102 = vmatpush.msra.mxu0 0.0
    %103 = vmatpush.msra.mxu0 0.0
    %104 = vmatpush.msra.mxu0 0.0
    %105 = vmatpush.msra.mxu0 0.0
    %106 = vmatpush.msra.mxu0 0.0
    %107 = vmatpush.msra.mxu0 0.0
    %108 = vmatpush.msra.mxu0 0.0
    %109 = vmatpush.msra.mxu0 0.0
    %v110 = vand.u32 %v64, 4294901760
    %v111 = vsub.f32 %v64, %v110
    %v112 = vand.u32 %v111, 4294901760
    %v113 = vsub.f32 %v111, %v112
    %v114 = vand.u32 %v113, 4294901760
    %115 = vmatpush.msra.mxu0 %v114
    %v116 = vand.u32 %v63, 4294901760
    %v117 = vsub.f32 %v63, %v116
    %v118 = vand.u32 %v117, 4294901760
    %v119 = vsub.f32 %v117, %v118
    %v120 = vand.u32 %v119, 4294901760
    %121 = vmatpush.msra.mxu0 %v120
    %v122 = vand.u32 %v62, 4294901760
    %v123 = vsub.f32 %v62, %v122
    %v124 = vand.u32 %v123, 4294901760
    %v125 = vsub.f32 %v123, %v124
    %v126 = vand.u32 %v125, 4294901760
    %127 = vmatpush.msra.mxu0 %v126
    %v128 = vand.u32 %v61, 4294901760
    %v129 = vsub.f32 %v61, %v128
    %v130 = vand.u32 %v129, 4294901760
    %v131 = vsub.f32 %v129, %v130
    %v132 = vand.u32 %v131, 4294901760
    %133 = vmatpush.msra.mxu0 %v132
    %v134 = vand.u32 %v67, 4294901760
    %135 = vmatmul.f32.gmra.mxu0 %v134
    %v136 = vpop.f32.mrf.mxu0
    %v137 = vadd.f32 %v96, %v136
    %138 = vdwg.mxu0
    %139 = vmatpush.msra.mxu0 0.0
    %140 = vmatpush.msra.mxu0 0.0
    %141 = vmatpush.msra.mxu0 0.0
    %142 = vmatpush.msra.mxu0 0.0
    %143 = vmatpush.msra.mxu0 0.0
    %144 = vmatpush.msra.mxu0 0.0
    %145 = vmatpush.msra.mxu0 0.0
    %146 = vmatpush.msra.mxu0 0.0
    %147 = vmatpush.msra.mxu0 0.0
    %148 = vmatpush.msra.mxu0 0.0
    %149 = vmatpush.msra.mxu0 0.0
    %150 = vmatpush.msra.mxu0 0.0
    %v151 = vand.u32 %v64, 4294901760
    %v152 = vsub.f32 %v64, %v151
    %153 = vmatpush.msra.mxu0 %v152
    %v154 = vand.u32 %v63, 4294901760
    %v155 = vsub.f32 %v63, %v154
    %156 = vmatpush.msra.mxu0 %v155
    %v157 = vand.u32 %v62, 4294901760
    %v158 = vsub.f32 %v62, %v157
    %159 = vmatpush.msra.mxu0 %v158
    %v160 = vand.u32 %v61, 4294901760
    %v161 = vsub.f32 %v61, %v160
    %162 = vmatpush.msra.mxu0 %v161
    %v163 = vand.u32 %v67, 4294901760
    %v164 = vsub.f32 %v67, %v163
    %165 = vmatmul.f32.gmra.mxu0 %v164
    %v166 = vpop.f32.mrf.mxu0
    %v167 = vadd.f32 %v137, %v166
    %168 = vdwg.mxu0
    %169 = vmatpush.msra.mxu0 0.0
    %170 = vmatpush.msra.mxu0 0.0
    %171 = vmatpush.msra.mxu0 0.0
    %172 = vmatpush.msra.mxu0 0.0
    %173 = vmatpush.msra.mxu0 0.0
    %174 = vmatpush.msra.mxu0 0.0
    %175 = vmatpush.msra.mxu0 0.0
    %176 = vmatpush.msra.mxu0 0.0
    %177 = vmatpush.msra.mxu0 0.0
    %178 = vmatpush.msra.mxu0 0.0
    %179 = vmatpush.msra.mxu0 0.0
    %180 = vmatpush.msra.mxu0 0.0
    %v181 = vand.u32 %v64, 4294901760
    %182 = vmatpush.msra.mxu0 %v181
    %v183 = vand.u32 %v63, 4294901760
    %184 = vmatpush.msra.mxu0 %v183
    %v185 = vand.u32 %v62, 4294901760
    %186 = vmatpush.msra.mxu0 %v185
    %v187 = vand.u32 %v61, 4294901760
    %188 = vmatpush.msra.mxu0 %v187
    %v189 = vand.u32 %v67, 4294901760
    %v190 = vsub.f32 %v67, %v189
    %v191 = vand.u32 %v190, 4294901760
    %192 = vmatmul.f32.gmra.mxu0 %v191
    %v193 = vpop.f32.mrf.mxu0
    %v194 = vadd.f32 %v167, %v193
    %195 = vdwg.mxu0
    %196 = vmatpush.msra.mxu0 0.0
    %197 = vmatpush.msra.mxu0 0.0
    %198 = vmatpush.msra.mxu0 0.0
    %199 = vmatpush.msra.mxu0 0.0
    %200 = vmatpush.msra.mxu0 0.0
    %201 = vmatpush.msra.mxu0 0.0
    %202 = vmatpush.msra.mxu0 0.0
    %203 = vmatpush.msra.mxu0 0.0
    %204 = vmatpush.msra.mxu0 0.0
    %205 = vmatpush.msra.mxu0 0.0
    %206 = vmatpush.msra.mxu0 0.0
    %207 = vmatpush.msra.mxu0 0.0
    %v208 = vand.u32 %v64, 4294901760
    %v209 = vsub.f32 %v64, %v208
    %v210 = vand.u32 %v209, 4294901760
    %211 = vmatpush.msra.mxu0 %v210
    %v212 = vand.u32 %v63, 4294901760
    %v213 = vsub.f32 %v63, %v212
    %v214 = vand.u32 %v213, 4294901760
    %215 = vmatpush.msra.mxu0 %v214
    %v216 = vand.u32 %v62, 4294901760
    %v217 = vsub.f32 %v62, %v216
    %v218 = vand.u32 %v217, 4294901760
    %219 = vmatpush.msra.mxu0 %v218
    %v220 = vand.u32 %v61, 4294901760
    %v221 = vsub.f32 %v61, %v220
    %v222 = vand.u32 %v221, 4294901760
    %223 = vmatpush.msra.mxu0 %v222
    %v224 = vand.u32 %v67, 4294901760
    %225 = vmatmul.f32.gmra.mxu0 %v224
    %v226 = vpop.f32.mrf.mxu0
    %v227 = vadd.f32 %v194, %v226
    %228 = vdwg.mxu0
    %229 = vmatpush.msra.mxu0 0.0
    %230 = vmatpush.msra.mxu0 0.0
    %231 = vmatpush.msra.mxu0 0.0
    %232 = vmatpush.msra.mxu0 0.0
    %233 = vmatpush.msra.mxu0 0.0
    %234 = vmatpush.msra.mxu0 0.0
    %235 = vmatpush.msra.mxu0 0.0
    %236 = vmatpush.msra.mxu0 0.0
    %237 = vmatpush.msra.mxu0 0.0
    %238 = vmatpush.msra.mxu0 0.0
    %239 = vmatpush.msra.mxu0 0.0
    %240 = vmatpush.msra.mxu0 0.0
    %v241 = vand.u32 %v64, 4294901760
    %242 = vmatpush.msra.mxu0 %v241
    %v243 = vand.u32 %v63, 4294901760
    %244 = vmatpush.msra.mxu0 %v243
    %v245 = vand.u32 %v62, 4294901760
    %246 = vmatpush.msra.mxu0 %v245
    %v247 = vand.u32 %v61, 4294901760
    %248 = vmatpush.msra.mxu0 %v247
    %v249 = vand.u32 %v67, 4294901760
    %250 = vmatmul.f32.gmra.mxu0 %v249
    %v251 = vpop.f32.mrf.mxu0
    %v252 = vadd.f32 %v227, %v251
    %253 = vdwg.mxu0
    %v254 = vld [vmem:[#allocation7] sm:$0xff]
    %v255 = vld [vmem:[#allocation7 + $0x8] sm:$0xff]
    %v256 = vld [vmem:[#allocation7 + $0x10] sm:$0xff]
    %v257 = vld [vmem:[#allocation7 + $0x18] sm:$0xff]
    %v258 = vld [vmem:[#allocation7 + $0x20] sm:$0xff]
    %v259 = vld [vmem:[#allocation7 + $0x28] sm:$0xff]
    %v260 = vld [vmem:[#allocation7 + $0x30] sm:$0xff]
    %v261 = vld [vmem:[#allocation7 + $0x38] sm:$0xff]
    %vm262 = vcmask 523264
    %v264 = vsel %vm262, %v252, 0
    %266 = vmatpush.msra.mxu0 0.0
    %267 = vmatpush.msra.mxu0 0.0
    %268 = vmatpush.msra.mxu0 0.0
    %269 = vmatpush.msra.mxu0 0.0
    %270 = vmatpush.msra.mxu0 0.0
    %271 = vmatpush.msra.mxu0 0.0
    %272 = vmatpush.msra.mxu0 0.0
    %273 = vmatpush.msra.mxu0 0.0
    %v274 = vand.u32 %v261, 4294901760
    %275 = vmatpush.msra.mxu0 %v274
    %v276 = vand.u32 %v260, 4294901760
    %277 = vmatpush.msra.mxu0 %v276
    %v278 = vand.u32 %v259, 4294901760
    %279 = vmatpush.msra.mxu0 %v278
    %v280 = vand.u32 %v258, 4294901760
    %281 = vmatpush.msra.mxu0 %v280
    %v282 = vand.u32 %v257, 4294901760
    %283 = vmatpush.msra.mxu0 %v282
    %v284 = vand.u32 %v256, 4294901760
    %285 = vmatpush.msra.mxu0 %v284
    %v286 = vand.u32 %v255, 4294901760
    %287 = vmatpush.msra.mxu0 %v286
    %v288 = vand.u32 %v254, 4294901760
    %289 = vmatpush.msra.mxu0 %v288
    %v290 = vand.u32 %v264, 4294901760
    %v291 = vsub.f32 %v264, %v290
    %v292 = vand.u32 %v291, 4294901760
    %v293 = vsub.f32 %v291, %v292
    %v294 = vand.u32 %v293, 4294901760
    %295 = vmatmul.f32.gmra.mxu0 %v294
    %v296 = vpop.f32.mrf.mxu0
    %v297 = vadd.f32 0.0, %v296
    %298 = vdwg.mxu0
    %299 = vmatpush.msra.mxu0 0.0
    %300 = vmatpush.msra.mxu0 0.0
    %301 = vmatpush.msra.mxu0 0.0
    %302 = vmatpush.msra.mxu0 0.0
    %303 = vmatpush.msra.mxu0 0.0
    %304 = vmatpush.msra.mxu0 0.0
    %305 = vmatpush.msra.mxu0 0.0
    %306 = vmatpush.msra.mxu0 0.0
    %v307 = vand.u32 %v261, 4294901760
    %v308 = vsub.f32 %v261, %v307
    %v309 = vand.u32 %v308, 4294901760
    %v310 = vsub.f32 %v308, %v309
    %v311 = vand.u32 %v310, 4294901760
    %312 = vmatpush.msra.mxu0 %v311
    %v313 = vand.u32 %v260, 4294901760
    %v314 = vsub.f32 %v260, %v313
    %v315 = vand.u32 %v314, 4294901760
    %v316 = vsub.f32 %v314, %v315
    %v317 = vand.u32 %v316, 4294901760
    %318 = vmatpush.msra.mxu0 %v317
    %v319 = vand.u32 %v259, 4294901760
    %v320 = vsub.f32 %v259, %v319
    %v321 = vand.u32 %v320, 4294901760
    %v322 = vsub.f32 %v320, %v321
    %v323 = vand.u32 %v322, 4294901760
    %324 = vmatpush.msra.mxu0 %v323
    %v325 = vand.u32 %v258, 4294901760
    %v326 = vsub.f32 %v258, %v325
    %v327 = vand.u32 %v326, 4294901760
    %v328 = vsub.f32 %v326, %v327
    %v329 = vand.u32 %v328, 4294901760
    %330 = vmatpush.msra.mxu0 %v329
    %v331 = vand.u32 %v257, 4294901760
    %v332 = vsub.f32 %v257, %v331
    %v333 = vand.u32 %v332, 4294901760
    %v334 = vsub.f32 %v332, %v333
    %v335 = vand.u32 %v334, 4294901760
    %336 = vmatpush.msra.mxu0 %v335
    %v337 = vand.u32 %v256, 4294901760
    %v338 = vsub.f32 %v256, %v337
    %v339 = vand.u32 %v338, 4294901760
    %v340 = vsub.f32 %v338, %v339
    %v341 = vand.u32 %v340, 4294901760
    %342 = vmatpush.msra.mxu0 %v341
    %v343 = vand.u32 %v255, 4294901760
    %v344 = vsub.f32 %v255, %v343
    %v345 = vand.u32 %v344, 4294901760
    %v346 = vsub.f32 %v344, %v345
    %v347 = vand.u32 %v346, 4294901760
    %348 = vmatpush.msra.mxu0 %v347
    %v349 = vand.u32 %v254, 4294901760
    %v350 = vsub.f32 %v254, %v349
    %v351 = vand.u32 %v350, 4294901760
    %v352 = vsub.f32 %v350, %v351
    %v353 = vand.u32 %v352, 4294901760
    %354 = vmatpush.msra.mxu0 %v353
    %v355 = vand.u32 %v264, 4294901760
    %356 = vmatmul.f32.gmra.mxu0 %v355
    %v357 = vpop.f32.mrf.mxu0
    %v358 = vadd.f32 %v297, %v357
    %359 = vdwg.mxu0
    %360 = vmatpush.msra.mxu0 0.0
    %361 = vmatpush.msra.mxu0 0.0
    %362 = vmatpush.msra.mxu0 0.0
    %363 = vmatpush.msra.mxu0 0.0
    %364 = vmatpush.msra.mxu0 0.0
    %365 = vmatpush.msra.mxu0 0.0
    %366 = vmatpush.msra.mxu0 0.0
    %367 = vmatpush.msra.mxu0 0.0
    %v368 = vand.u32 %v261, 4294901760
    %v369 = vsub.f32 %v261, %v368
    %370 = vmatpush.msra.mxu0 %v369
    %v371 = vand.u32 %v260, 4294901760
    %v372 = vsub.f32 %v260, %v371
    %373 = vmatpush.msra.mxu0 %v372
    %v374 = vand.u32 %v259, 4294901760
    %v375 = vsub.f32 %v259, %v374
    %376 = vmatpush.msra.mxu0 %v375
    %v377 = vand.u32 %v258, 4294901760
    %v378 = vsub.f32 %v258, %v377
    %379 = vmatpush.msra.mxu0 %v378
    %v380 = vand.u32 %v257, 4294901760
    %v381 = vsub.f32 %v257, %v380
    %382 = vmatpush.msra.mxu0 %v381
    %v383 = vand.u32 %v256, 4294901760
    %v384 = vsub.f32 %v256, %v383
    %385 = vmatpush.msra.mxu0 %v384
    %v386 = vand.u32 %v255, 4294901760
    %v387 = vsub.f32 %v255, %v386
    %388 = vmatpush.msra.mxu0 %v387
    %v389 = vand.u32 %v254, 4294901760
    %v390 = vsub.f32 %v254, %v389
    %391 = vmatpush.msra.mxu0 %v390
    %v392 = vand.u32 %v264, 4294901760
    %v393 = vsub.f32 %v264, %v392
    %394 = vmatmul.f32.gmra.mxu0 %v393
    %v395 = vpop.f32.mrf.mxu0
    %v396 = vadd.f32 %v358, %v395
    %397 = vdwg.mxu0
    %398 = vmatpush.msra.mxu0 0.0
    %399 = vmatpush.msra.mxu0 0.0
    %400 = vmatpush.msra.mxu0 0.0
    %401 = vmatpush.msra.mxu0 0.0
    %402 = vmatpush.msra.mxu0 0.0
    %403 = vmatpush.msra.mxu0 0.0
    %404 = vmatpush.msra.mxu0 0.0
    %405 = vmatpush.msra.mxu0 0.0
    %v406 = vand.u32 %v261, 4294901760
    %407 = vmatpush.msra.mxu0 %v406
    %v408 = vand.u32 %v260, 4294901760
    %409 = vmatpush.msra.mxu0 %v408
    %v410 = vand.u32 %v259, 4294901760
    %411 = vmatpush.msra.mxu0 %v410
    %v412 = vand.u32 %v258, 4294901760
    %413 = vmatpush.msra.mxu0 %v412
    %v414 = vand.u32 %v257, 4294901760
    %415 = vmatpush.msra.mxu0 %v414
    %v416 = vand.u32 %v256, 4294901760
    %417 = vmatpush.msra.mxu0 %v416
    %v418 = vand.u32 %v255, 4294901760
    %419 = vmatpush.msra.mxu0 %v418
    %v420 = vand.u32 %v254, 4294901760
    %421 = vmatpush.msra.mxu0 %v420
    %v422 = vand.u32 %v264, 4294901760
    %v423 = vsub.f32 %v264, %v422
    %v424 = vand.u32 %v423, 4294901760
    %425 = vmatmul.f32.gmra.mxu0 %v424
    %v426 = vpop.f32.mrf.mxu0
    %v427 = vadd.f32 %v396, %v426
    %428 = vdwg.mxu0
    %429 = vmatpush.msra.mxu0 0.0
    %430 = vmatpush.msra.mxu0 0.0
    %431 = vmatpush.msra.mxu0 0.0
    %432 = vmatpush.msra.mxu0 0.0
    %433 = vmatpush.msra.mxu0 0.0
    %434 = vmatpush.msra.mxu0 0.0
    %435 = vmatpush.msra.mxu0 0.0
    %436 = vmatpush.msra.mxu0 0.0
    %v437 = vand.u32 %v261, 4294901760
    %v438 = vsub.f32 %v261, %v437
    %v439 = vand.u32 %v438, 4294901760
    %440 = vmatpush.msra.mxu0 %v439
    %v441 = vand.u32 %v260, 4294901760
    %v442 = vsub.f32 %v260, %v441
    %v443 = vand.u32 %v442, 4294901760
    %444 = vmatpush.msra.mxu0 %v443
    %v445 = vand.u32 %v259, 4294901760
    %v446 = vsub.f32 %v259, %v445
    %v447 = vand.u32 %v446, 4294901760
    %448 = vmatpush.msra.mxu0 %v447
    %v449 = vand.u32 %v258, 4294901760
    %v450 = vsub.f32 %v258, %v449
    %v451 = vand.u32 %v450, 4294901760
    %452 = vmatpush.msra.mxu0 %v451
    %v453 = vand.u32 %v257, 4294901760
    %v454 = vsub.f32 %v257, %v453
    %v455 = vand.u32 %v454, 4294901760
    %456 = vmatpush.msra.mxu0 %v455
    %v457 = vand.u32 %v256, 4294901760
    %v458 = vsub.f32 %v256, %v457
    %v459 = vand.u32 %v458, 4294901760
    %460 = vmatpush.msra.mxu0 %v459
    %v461 = vand.u32 %v255, 4294901760
    %v462 = vsub.f32 %v255, %v461
    %v463 = vand.u32 %v462, 4294901760
    %464 = vmatpush.msra.mxu0 %v463
    %v465 = vand.u32 %v254, 4294901760
    %v466 = vsub.f32 %v254, %v465
    %v467 = vand.u32 %v466, 4294901760
    %468 = vmatpush.msra.mxu0 %v467
    %v469 = vand.u32 %v264, 4294901760
    %470 = vmatmul.f32.gmra.mxu0 %v469
    %v471 = vpop.f32.mrf.mxu0
    %v472 = vadd.f32 %v427, %v471
    %473 = vdwg.mxu0
    %474 = vmatpush.msra.mxu0 0.0
    %475 = vmatpush.msra.mxu0 0.0
    %476 = vmatpush.msra.mxu0 0.0
    %477 = vmatpush.msra.mxu0 0.0
    %478 = vmatpush.msra.mxu0 0.0
    %479 = vmatpush.msra.mxu0 0.0
    %480 = vmatpush.msra.mxu0 0.0
    %481 = vmatpush.msra.mxu0 0.0
    %v482 = vand.u32 %v261, 4294901760
    %483 = vmatpush.msra.mxu0 %v482
    %v484 = vand.u32 %v260, 4294901760
    %485 = vmatpush.msra.mxu0 %v484
    %v486 = vand.u32 %v259, 4294901760
    %487 = vmatpush.msra.mxu0 %v486
    %v488 = vand.u32 %v258, 4294901760
    %489 = vmatpush.msra.mxu0 %v488
    %v490 = vand.u32 %v257, 4294901760
    %491 = vmatpush.msra.mxu0 %v490
    %v492 = vand.u32 %v256, 4294901760
    %493 = vmatpush.msra.mxu0 %v492
    %v494 = vand.u32 %v255, 4294901760
    %495 = vmatpush.msra.mxu0 %v494
    %v496 = vand.u32 %v254, 4294901760
    %497 = vmatpush.msra.mxu0 %v496
    %v498 = vand.u32 %v264, 4294901760
    %499 = vmatmul.f32.gmra.mxu0 %v498
    %v500 = vpop.f32.mrf.mxu0
    %v501 = vadd.f32 %v472, %v500
    %502 = vdwg.mxu0
    %503 = vst [vmem:[#allocation8] sm:$0xff] %v501
    // Predicated region
    $region26: #{tpu_custom_call.1} parent=1 // pred_check
      _
    $region27: #{tpu_custom_call.1} parent=1 // pred_check_branch
      %505 = sbr.rel (0) target = $region29
    $region28: #{tpu_custom_call.1} parent=1 // pred_region
      %507 = vsyncadd [#allocation4], 0
      %s509 = sshll.u32 [#allocation8], 4
      %s510 = int_to_ptr.vmem [resolvable:$true] %s509
      %s511 = sshll.u32 %s3, 4
      %s512 = int_to_ptr.hbm [resolvable:$true] %s511
      %514 = dma.vmem_to_hbm [thread:$0]  %s510, 128, %s512, [#allocation4]
    $region29: #{tpu_custom_call.1} parent=1 // pred_fallthru
      _
    // Predicated region
    $region30: #{tpu_custom_call.1} parent=1 // pred_check
      _
    $region31: #{tpu_custom_call.1} parent=1 // pred_check_branch
      %516 = sbr.rel (0) target = $region33
    $region32: #{tpu_custom_call.1} parent=1 // pred_region
      %518 = dma.done [#allocation4], 128
    $region33: #{tpu_custom_call.1} parent=1 // pred_fallthru
      _
    %519 = vsyncpa [#allocation3], 1
    %520 = vsyncpa [#allocation6], 1
    %521 = vsyncpa [#allocation4], 1

</llo_original>
